<compile_context>
chip_gen: v7x
topology: tpu7x:2x2x1
jax: 0.10.0
libtpu: 0.0.40
codegen_flags: <defaults>
</compile_context>

<pallas_src>
import jax
import jax.numpy as jnp
from jax.experimental import pallas as pl
from jax.experimental.pallas import tpu as pltpu

MEM_DIM = 128          # mem_dim (hidden size); gate slices stay lane-aligned
BATCH = 8              # batch size (one sublane tile)
NUM_TOKENS = 10        # len(JSONConstructionTokens)
LOGIT_PAD = 128        # lane-padded logit width


def json_decoder_step_kernel(h_ref, c_ref, w_ref, b_ref, out_ref):
    """One LSTM cell step + node_predictor + fused (bias + valid-token mask).

    h_ref : (1, B, H) bf16   -- LSTM h_0, pre-cast in the wrapper
    c_ref : (1, B, H) f32    -- LSTM c_0
    w_ref : (H, 4H + LOGIT_PAD) bf16  -- [W_hh^T | W_pred^T (lane-padded)]
    b_ref : (1, 4H + LOGIT_PAD) f32   -- [emb[START]@W_ih^T + b_ih + b_hh |
                                          b_pred + valid_token_mask(START)]
    """
    H = c_ref.shape[2]
    G = 4 * H

    h = h_ref[0]                       # (B, H) bf16
    c = c_ref[0]                       # (B, H) f32

    # Static, lane-tile-aligned views into the fused operands (zero-cost).
    w_hh = w_ref[:, 0:G]               # (H, 4H)       bf16
    w_pred = w_ref[:, G:]              # (H, LOGIT_PAD) bf16
    gate_b = b_ref[:, 0:G]             # (1, 4H)        f32
    pred_b = b_ref[:, G:]              # (1, LOGIT_PAD) f32 (contains -inf mask)

    # LSTM gates (PyTorch gate order: input, forget, cell, output).
    # bf16 MXU push, f32 accumulation; x-path already folded into gate_b.
    gates = jnp.dot(h, w_hh, preferred_element_type=jnp.float32) + gate_b

    # Single-EUP-op sigmoid: sigmoid(x) == 0.5 * (tanh(0.5 x) + 1).
    def _sigmoid(x):
        return 0.5 * (jnp.tanh(0.5 * x) + 1.0)

    i_g = _sigmoid(gates[:, 0:H])
    f_g = _sigmoid(gates[:, H:2 * H])
    g_g = jnp.tanh(gates[:, 2 * H:3 * H])
    o_g = _sigmoid(gates[:, 3 * H:4 * H])

    c_new = f_g * c + i_g * g_g
    h_new = o_g * jnp.tanh(c_new)      # == generator_output for this step

    # node_predictor + (b_pred + valid_token_mask(START)); b_mask is 0 at i==0.
    # TODO(synk): optionally force the W_pred RHS push above the EUP chain via
    # pltpu.matmul_push_rhs/acc_lhs/pop if the bundle dump shows it serialized.
    logits = jnp.dot(h_new.astype(jnp.bfloat16), w_pred,
                     preferred_element_type=jnp.float32)
    out_ref[...] = logits + pred_b


def init_params(key, mem_dim=MEM_DIM, num_tokens=NUM_TOKENS):
    ks = jax.random.split(key, 7)
    s = 0.05
    return {
        "emb":    s * jax.random.normal(ks[0], (num_tokens, mem_dim), jnp.float32),
        "w_ih":   s * jax.random.normal(ks[1], (4 * mem_dim, mem_dim), jnp.float32),
        "w_hh":   s * jax.random.normal(ks[2], (4 * mem_dim, mem_dim), jnp.float32),
        "b_ih":   s * jax.random.normal(ks[3], (4 * mem_dim,), jnp.float32),
        "b_hh":   s * jax.random.normal(ks[4], (4 * mem_dim,), jnp.float32),
        "w_pred": s * jax.random.normal(ks[5], (num_tokens, mem_dim), jnp.float32),
        "b_pred": s * jax.random.normal(ks[6], (num_tokens,), jnp.float32),
    }


def prepare_params(params):
    """One-time parameter preprocessing (hoisted out of the per-call path)."""
    H = params["w_hh"].shape[1]
    # Gate slices / fused-operand splits are lane-tile aligned only if H % 128 == 0.
    assert H % 128 == 0, "mem_dim must be a multiple of 128 for lane alignment"

    # Fold the constant START-token embedding through W_ih into the gate bias.
    x_start = params["emb"][1]                                     # (H,)
    gate_bias = (x_start @ params["w_ih"].T
                 + params["b_ih"] + params["b_hh"]).reshape(1, 4 * H)

    # valid_token_mask(START): -inf at token ids {1, 3, 5}, 0 elsewhere.
    mask_vals = [0.0 if i not in (1, 3, 5) else -float("inf")
                 for i in range(NUM_TOKENS)]
    mask_row = jnp.array(mask_vals + [0.0] * (LOGIT_PAD - NUM_TOKENS),
                         dtype=jnp.float32)
    pred_bias_mask = (jnp.zeros((LOGIT_PAD,), jnp.float32)
                      .at[:NUM_TOKENS].set(params["b_pred"])
                      + mask_row).reshape(1, LOGIT_PAD)

    # Transpose + lane-pad weights, cast to bf16 (accumulation stays f32).
    w_hh_t = params["w_hh"].T.astype(jnp.bfloat16)                 # (H, 4H)
    w_pred_t = (jnp.zeros((H, LOGIT_PAD), jnp.bfloat16)
                .at[:, :NUM_TOKENS].set(params["w_pred"].T.astype(jnp.bfloat16)))

    # Fuse into two operands: one weight slab, one bias/mask row.
    w_fused = jnp.concatenate([w_hh_t, w_pred_t], axis=1)          # (H, 4H+128) bf16
    b_fused = jnp.concatenate([gate_bias.astype(jnp.float32),
                               pred_bias_mask], axis=1)            # (1, 4H+128) f32

    return {"w": w_fused, "b": b_fused}


def json_structure_decoder_forward(memory, hidden, prepped):
    """memory, hidden: (1, batch, mem_dim) float32 (LSTM c_0 and h_0)."""
    batch = memory.shape[1]
    H = memory.shape[2]

    # i == 0: every sequence starts with the START token (value 1).
    current_node = jnp.ones((1, batch), dtype=jnp.int32)

    # h is only consumed by the MXU -> pre-cast to bf16 (halves its DMA and
    # drops the in-kernel pack).  c is elementwise-only, stays f32.
    h_bf16 = hidden.astype(jnp.bfloat16)

    vmem_spec = pl.BlockSpec(memory_space=pltpu.MemorySpace.VMEM)

    cost = pl.CostEstimate(
        flops=2 * batch * H * (4 * H + LOGIT_PAD),
        transcendentals=batch * (4 * H + H),
        bytes_accessed=(prepped["w"].size * 2
                        + prepped["b"].size * 4
                        + batch * H * 2          # h (bf16)
                        + batch * H * 4          # c (f32)
                        + batch * LOGIT_PAD * 4),
    )

    out_padded = pl.pallas_call(
        json_decoder_step_kernel,
        out_shape=jax.ShapeDtypeStruct((batch, LOGIT_PAD), jnp.float32),
        in_specs=[vmem_spec,   # hidden (1, B, H) bf16
                  vmem_spec,   # memory (1, B, H) f32
                  vmem_spec,   # fused [W_hh^T | W_pred^T] bf16
                  vmem_spec],  # fused [gate bias | b_pred + START mask] f32
        out_specs=vmem_spec,
        cost_estimate=cost,
    )(h_bf16, memory, prepped["w"], prepped["b"])

    masked_output = out_padded[:, :NUM_TOKENS].reshape(1, batch, NUM_TOKENS)
    # TODO(synk): later decode iterations (bracket_stack / argmax feedback loop)
    # are unreachable in the reference forward (early return) and are omitted.
    return current_node, masked_output


if __name__ == "__main__":
    key = jax.random.PRNGKey(0)
    k_mem, k_hid, k_par = jax.random.split(key, 3)

    memory = jax.random.normal(k_mem, (1, BATCH, MEM_DIM), jnp.float32)
    hidden = jax.random.normal(k_hid, (1, BATCH, MEM_DIM), jnp.float32)
    params = init_params(k_par)
    prepped = prepare_params(params)          # one-time preprocessing
    prepped = jax.tree_util.tree_map(jax.block_until_ready, prepped)

    current_node, masked_output = json_structure_decoder_forward(
        memory, hidden, prepped)
    jax.block_until_ready(masked_output)

    assert current_node.shape == (1, BATCH)
    assert masked_output.shape == (1, BATCH, NUM_TOKENS)
    # Masked positions {1, 3, 5} must be -inf, others finite.
    assert bool(jnp.all(jnp.isneginf(masked_output[..., jnp.array([1, 3, 5])])))
    assert bool(jnp.all(jnp.isfinite(
        masked_output[..., jnp.array([0, 2, 4, 6, 7, 8, 9])])))
    print("KERNEL_OK")
</pallas_src>

<mosaic_0001>
module attributes {stable_mosaic.version = 11 : i64} {
  func.func @json_decoder_step_kernel(%arg0: memref<1x8x128xbf16, #tpu.memory_space<vmem>>, %arg1: memref<1x8x128xf32, #tpu.memory_space<vmem>>, %arg2: memref<128x640xbf16, #tpu.memory_space<vmem>>, %arg3: memref<1x640xf32, #tpu.memory_space<vmem>>, %arg4: memref<8x128xf32, #tpu.memory_space<vmem>>) attributes {dimension_semantics = [], scalar_prefetch = 0 : i64, scratch_operands = 0 : i64, tpu.core_type = #tpu.core_type<tc>} {
    %c0 = arith.constant 0 : index
    %c0_0 = arith.constant 0 : index
    %c0_1 = arith.constant 0 : index
    %0 = vector.load %arg0[%c0, %c0_0, %c0_1] : memref<1x8x128xbf16, #tpu.memory_space<vmem>>, vector<1x8x128xbf16>
    %1 = vector.shape_cast %0 : vector<1x8x128xbf16> to vector<8x128xbf16>
    %c0_2 = arith.constant 0 : index
    %c0_3 = arith.constant 0 : index
    %c0_4 = arith.constant 0 : index
    %2 = vector.load %arg1[%c0_2, %c0_3, %c0_4] : memref<1x8x128xf32, #tpu.memory_space<vmem>>, vector<1x8x128xf32>
    %3 = vector.shape_cast %2 : vector<1x8x128xf32> to vector<8x128xf32>
    %c0_5 = arith.constant 0 : index
    %c0_6 = arith.constant 0 : index
    %4 = vector.load %arg2[%c0_5, %c0_6] : memref<128x640xbf16, #tpu.memory_space<vmem>>, vector<128x512xbf16>
    %c0_7 = arith.constant 0 : index
    %c512 = arith.constant 512 : index
    %5 = vector.load %arg2[%c0_7, %c512] : memref<128x640xbf16, #tpu.memory_space<vmem>>, vector<128x128xbf16>
    %c0_8 = arith.constant 0 : index
    %c0_9 = arith.constant 0 : index
    %6 = vector.load %arg3[%c0_8, %c0_9] : memref<1x640xf32, #tpu.memory_space<vmem>>, vector<1x512xf32>
    %c0_10 = arith.constant 0 : index
    %c512_11 = arith.constant 512 : index
    %7 = vector.load %arg3[%c0_10, %c512_11] : memref<1x640xf32, #tpu.memory_space<vmem>>, vector<1x128xf32>
    %cst = arith.constant dense<0.000000e+00> : vector<8x512xf32>
    %8 = tpu.matmul %1, %4, %cst {dimension_numbers = #tpu.dot_dimension_numbers<[1], [0], [0], [1], [0, 0, 1, 1], [], []>} : vector<8x128xbf16>, vector<128x512xbf16>, vector<8x512xf32> -> vector<8x512xf32>
    %9 = vector.broadcast %6 : vector<1x512xf32> to vector<8x512xf32>
    %10 = arith.addf %8, %9 : vector<8x512xf32>
    %11 = vector.extract_strided_slice %10 {offsets = [0, 0], sizes = [8, 128], strides = [1, 1]} : vector<8x512xf32> to vector<8x128xf32>
    %cst_12 = arith.constant 5.000000e-01 : f32
    %12 = vector.broadcast %cst_12 : f32 to vector<8x128xf32>
    %13 = arith.mulf %12, %11 : vector<8x128xf32>
    %14 = math.tanh %13 : vector<8x128xf32>
    %cst_13 = arith.constant 1.000000e+00 : f32
    %15 = vector.broadcast %cst_13 : f32 to vector<8x128xf32>
    %16 = arith.addf %14, %15 : vector<8x128xf32>
    %cst_14 = arith.constant 5.000000e-01 : f32
    %17 = vector.broadcast %cst_14 : f32 to vector<8x128xf32>
    %18 = arith.mulf %17, %16 : vector<8x128xf32>
    %19 = vector.extract_strided_slice %10 {offsets = [0, 128], sizes = [8, 128], strides = [1, 1]} : vector<8x512xf32> to vector<8x128xf32>
    %cst_15 = arith.constant 5.000000e-01 : f32
    %20 = vector.broadcast %cst_15 : f32 to vector<8x128xf32>
    %21 = arith.mulf %20, %19 : vector<8x128xf32>
    %22 = math.tanh %21 : vector<8x128xf32>
    %cst_16 = arith.constant 1.000000e+00 : f32
    %23 = vector.broadcast %cst_16 : f32 to vector<8x128xf32>
    %24 = arith.addf %22, %23 : vector<8x128xf32>
    %cst_17 = arith.constant 5.000000e-01 : f32
    %25 = vector.broadcast %cst_17 : f32 to vector<8x128xf32>
    %26 = arith.mulf %25, %24 : vector<8x128xf32>
    %27 = vector.extract_strided_slice %10 {offsets = [0, 256], sizes = [8, 128], strides = [1, 1]} : vector<8x512xf32> to vector<8x128xf32>
    %28 = math.tanh %27 : vector<8x128xf32>
    %29 = vector.extract_strided_slice %10 {offsets = [0, 384], sizes = [8, 128], strides = [1, 1]} : vector<8x512xf32> to vector<8x128xf32>
    %cst_18 = arith.constant 5.000000e-01 : f32
    %30 = vector.broadcast %cst_18 : f32 to vector<8x128xf32>
    %31 = arith.mulf %30, %29 : vector<8x128xf32>
    %32 = math.tanh %31 : vector<8x128xf32>
    %cst_19 = arith.constant 1.000000e+00 : f32
    %33 = vector.broadcast %cst_19 : f32 to vector<8x128xf32>
    %34 = arith.addf %32, %33 : vector<8x128xf32>
    %cst_20 = arith.constant 5.000000e-01 : f32
    %35 = vector.broadcast %cst_20 : f32 to vector<8x128xf32>
    %36 = arith.mulf %35, %34 : vector<8x128xf32>
    %37 = arith.mulf %26, %3 : vector<8x128xf32>
    %38 = arith.mulf %18, %28 : vector<8x128xf32>
    %39 = arith.addf %37, %38 : vector<8x128xf32>
    %40 = math.tanh %39 : vector<8x128xf32>
    %41 = arith.mulf %36, %40 : vector<8x128xf32>
    %42 = arith.truncf %41 : vector<8x128xf32> to vector<8x128xbf16>
    %cst_21 = arith.constant dense<0.000000e+00> : vector<8x128xf32>
    %43 = tpu.matmul %42, %5, %cst_21 {dimension_numbers = #tpu.dot_dimension_numbers<[1], [0], [0], [1], [0, 0, 1, 1], [], []>} : vector<8x128xbf16>, vector<128x128xbf16>, vector<8x128xf32> -> vector<8x128xf32>
    %44 = vector.broadcast %7 : vector<1x128xf32> to vector<8x128xf32>
    %45 = arith.addf %43, %44 : vector<8x128xf32>
    %c0_22 = arith.constant 0 : index
    %c0_23 = arith.constant 0 : index
    %46 = vector.load %arg4[%c0_22, %c0_23] : memref<8x128xf32, #tpu.memory_space<vmem>>, vector<8x128xf32>
    tpu.vector_store %arg4[%c0_22, %c0_23], %45 {strides = array<i32>} : memref<8x128xf32, #tpu.memory_space<vmem>>, vector<8x128xf32>,
    return
  }
}

</mosaic_0001>

<llo_original>
// kernel: tpu_custom_call.1
$region0: #{tpu_custom_call.1}
  #allocation0 [shape = 'u32[]', space=smem, size = 0x4, offset = 0x4, fixed_abs, tag = 'smem constant byte address 0x4 - core index']
  #allocation1 [shape = 'u32[144,128]{1,0:T(1,128)}', space=vmem, size = 0x12000, scoped, tag = 'internal scratch']
  %s0 = inlined_call_operand.hbm [shape: bf16[1,8,128], index: 0, kind: input, shape index: {}]
  %s1 = inlined_call_operand.hbm [shape: f32[1,8,128], index: 1, kind: input, shape index: {}]
  %s2 = inlined_call_operand.hbm [shape: bf16[128,640], index: 2, kind: input, shape index: {}]
  %s3 = inlined_call_operand.vmem [shape: f32[1,640], index: 3, kind: input, shape index: {}]
  %s4 = inlined_call_operand.hbm [shape: f32[8,128], index: 4, kind: output, shape index: {}]
  %s5 = sld [smem:[#allocation0]]
  $region38: #{tpu_custom_call.1} parent=0
    _
  %s7 = ssub.s32 1, %s5
  %s8 = scalar_select 0, %s7, %s5
  $region1: #{tpu_custom_call.1} parent=0
    #allocation2 [shape = 'u8[2048]{0}', space=vmem, size = 0x800, scoped, tag = 'input window, operand 0, single buffered']
    #allocation3 [shape = 's32[1]{0}', space=sflag, size = 0x4, scoped, tag = 'scoped memory for tpu_custom_call.1']
    #allocation4 [shape = 's32[1]{0}', space=sflag, size = 0x4, scoped, tag = 'scoped memory for tpu_custom_call.1']
    #allocation5 [shape = 'u8[4096]{0}', space=vmem, size = 0x1000, scoped, tag = 'input window, operand 1, single buffered']
    #allocation6 [shape = 's32[1]{0}', space=sflag, size = 0x4, scoped, tag = 'scoped memory for tpu_custom_call.1']
    #allocation7 [shape = 'u8[163840]{0}', space=vmem, size = 0x28000, scoped, tag = 'input window, operand 2, single buffered']
    #allocation8 [shape = 'u8[4096]{0}', space=vmem, size = 0x1000, scoped, tag = 'output window, operand 0, single buffered']
    %9 = vsyncpa [#allocation3], 0
    %10 = vsyncpa [#allocation6], 0
    %11 = vsyncpa [#allocation4], 0
    // Predicated region
    $region2: #{tpu_custom_call.1} parent=1 // pred_check
      _
    $region3: #{tpu_custom_call.1} parent=1 // pred_check_branch
      %13 = sbr.rel (0) target = $region5
    $region4: #{tpu_custom_call.1} parent=1 // pred_region
      %s15 = ssub.s32 64, 64
      %16 = vsyncadd [#allocation3], %s15
      %s18 = sshll.u32 [#allocation2], 4
      %s19 = int_to_ptr.vmem [resolvable:$true] %s18
      %21 = dma.hbm_to_vmem [thread:$0]  %s0, 64, %s19, [#allocation3]
    $region5: #{tpu_custom_call.1} parent=1 // pred_fallthru
      _
    // Predicated region
    $region6: #{tpu_custom_call.1} parent=1 // pred_check
      _
    $region7: #{tpu_custom_call.1} parent=1 // pred_check_branch
      %23 = sbr.rel (0) target = $region9
    $region8: #{tpu_custom_call.1} parent=1 // pred_region
      %s25 = ssub.s32 128, 128
      %26 = vsyncadd [#allocation6], %s25
      %s28 = sshll.u32 [#allocation5], 4
      %s29 = int_to_ptr.vmem [resolvable:$true] %s28
      %31 = dma.hbm_to_vmem [thread:$0]  %s1, 128, %s29, [#allocation6]
    $region9: #{tpu_custom_call.1} parent=1 // pred_fallthru
      _
    // Predicated region
    $region10: #{tpu_custom_call.1} parent=1 // pred_check
      _
    $region11: #{tpu_custom_call.1} parent=1 // pred_check_branch
      %33 = sbr.rel (0) target = $region13
    $region12: #{tpu_custom_call.1} parent=1 // pred_region
      %s35 = ssub.s32 5120, 5120
      %36 = vsyncadd [#allocation6], %s35
      %s37 = sshll.u32 [#allocation7], 4
      %s38 = int_to_ptr.vmem [resolvable:$true] %s37
      %43 = dma.hbm_to_vmem [thread:$0]  %s2, 5120, %s38, [#allocation6], 320, 320, 20
    $region13: #{tpu_custom_call.1} parent=1 // pred_fallthru
      _
    // Predicated region
    $region14: #{tpu_custom_call.1} parent=1 // pred_check
      _
    $region15: #{tpu_custom_call.1} parent=1 // pred_check_branch
      %45 = sbr.rel (0) target = $region17
    $region16: #{tpu_custom_call.1} parent=1 // pred_region
      _
    $region17: #{tpu_custom_call.1} parent=1 // pred_fallthru
      _
    // Predicated region
    $region18: #{tpu_custom_call.1} parent=1 // pred_check
      _
    $region19: #{tpu_custom_call.1} parent=1 // pred_check_branch
      %47 = sbr.rel (0) target = $region21
    $region20: #{tpu_custom_call.1} parent=1 // pred_region
      %48 = dma.done [#allocation3], 64
    $region21: #{tpu_custom_call.1} parent=1 // pred_fallthru
      _
    // Predicated region
    $region22: #{tpu_custom_call.1} parent=1 // pred_check
      _
    $region23: #{tpu_custom_call.1} parent=1 // pred_check_branch
      %50 = sbr.rel (0) target = $region25
    $region24: #{tpu_custom_call.1} parent=1 // pred_region
      %51 = dma.done [#allocation6], 128
    $region25: #{tpu_custom_call.1} parent=1 // pred_fallthru
      _
    // Predicated region
    $region26: #{tpu_custom_call.1} parent=1 // pred_check
      _
    $region27: #{tpu_custom_call.1} parent=1 // pred_check_branch
      %53 = sbr.rel (0) target = $region29
    $region28: #{tpu_custom_call.1} parent=1 // pred_region
      %54 = dma.done [#allocation6], 5120
    $region29: #{tpu_custom_call.1} parent=1 // pred_fallthru
      _
    %v56 = vld [vmem:[#allocation2] sm:$0xf]
    %v57 = vld [vmem:[#allocation5] sm:$0xff]
    %v58 = vld [vmem:[#allocation7] sm:$0xff]
    %v59 = vld [vmem:[#allocation7 + $0x8] sm:$0xff]
    %v60 = vld [vmem:[#allocation7 + $0x14] sm:$0xff]
    %v61 = vld [vmem:[#allocation7 + $0x1c] sm:$0xff]
    %v62 = vld [vmem:[#allocation7 + $0x28] sm:$0xff]
    %v63 = vld [vmem:[#allocation7 + $0x30] sm:$0xff]
    %v64 = vld [vmem:[#allocation7 + $0x3c] sm:$0xff]
    %v65 = vld [vmem:[#allocation7 + $0x44] sm:$0xff]
    %v66 = vld [vmem:[#allocation7 + $0x50] sm:$0xff]
    %v67 = vld [vmem:[#allocation7 + $0x58] sm:$0xff]
    %v68 = vld [vmem:[#allocation7 + $0x64] sm:$0xff]
    %v69 = vld [vmem:[#allocation7 + $0x6c] sm:$0xff]
    %v70 = vld [vmem:[#allocation7 + $0x78] sm:$0xff]
    %v71 = vld [vmem:[#allocation7 + $0x80] sm:$0xff]
    %v72 = vld [vmem:[#allocation7 + $0x8c] sm:$0xff]
    %v73 = vld [vmem:[#allocation7 + $0x94] sm:$0xff]
    %v74 = vld [vmem:[#allocation7 + $0xa0] sm:$0xff]
    %v75 = vld [vmem:[#allocation7 + $0xa8] sm:$0xff]
    %v76 = vld [vmem:[#allocation7 + $0xb4] sm:$0xff]
    %v77 = vld [vmem:[#allocation7 + $0xbc] sm:$0xff]
    %v78 = vld [vmem:[#allocation7 + $0xc8] sm:$0xff]
    %v79 = vld [vmem:[#allocation7 + $0xd0] sm:$0xff]
    %v80 = vld [vmem:[#allocation7 + $0xdc] sm:$0xff]
    %v81 = vld [vmem:[#allocation7 + $0xe4] sm:$0xff]
    %v82 = vld [vmem:[#allocation7 + $0xf0] sm:$0xff]
    %v83 = vld [vmem:[#allocation7 + $0xf8] sm:$0xff]
    %v84 = vld [vmem:[#allocation7 + $0x104] sm:$0xff]
    %v85 = vld [vmem:[#allocation7 + $0x10c] sm:$0xff]
    %v86 = vld [vmem:[#allocation7 + $0x118] sm:$0xff]
    %v87 = vld [vmem:[#allocation7 + $0x120] sm:$0xff]
    %v88 = vld [vmem:[#allocation7 + $0x12c] sm:$0xff]
    %v89 = vld [vmem:[#allocation7 + $0x134] sm:$0xff]
    %v90 = vld [vmem:[#allocation7 + $0x10] sm:$0xf]
    %v91 = vld [vmem:[#allocation7 + $0x24] sm:$0xf]
    %v92 = vld [vmem:[#allocation7 + $0x38] sm:$0xf]
    %v93 = vld [vmem:[#allocation7 + $0x4c] sm:$0xf]
    %v94 = vld [vmem:[#allocation7 + $0x60] sm:$0xf]
    %v95 = vld [vmem:[#allocation7 + $0x74] sm:$0xf]
    %v96 = vld [vmem:[#allocation7 + $0x88] sm:$0xf]
    %v97 = vld [vmem:[#allocation7 + $0x9c] sm:$0xf]
    %v98 = vld [vmem:[#allocation7 + $0xb0] sm:$0xf]
    %v99 = vld [vmem:[#allocation7 + $0xc4] sm:$0xf]
    %v100 = vld [vmem:[#allocation7 + $0xd8] sm:$0xf]
    %v101 = vld [vmem:[#allocation7 + $0xec] sm:$0xf]
    %v102 = vld [vmem:[#allocation7 + $0x100] sm:$0xf]
    %v103 = vld [vmem:[#allocation7 + $0x114] sm:$0xf]
    %v104 = vld [vmem:[#allocation7 + $0x128] sm:$0xf]
    %v105 = vld [vmem:[#allocation7 + $0x13c] sm:$0xf]
    %v106 = vld [vmem:[%s3] sm:$0xf]
    %v107 = vld [vmem:[%s3 + $0x4] sm:$0x1]
    %v109 = vlaneseq
    %v110 = vshrl.u32 %v109, 7
    %v111 = vsub.s32 0, %v110
    %v112 = vrot.slane %v106, %v111
    %v113 = vlaneseq
    %v114 = vshrl.u32 %v113, 7
    %v115 = vsub.s32 1, %v114
    %v116 = vrot.slane %v106, %v115
    %v117 = vlaneseq
    %v118 = vshrl.u32 %v117, 7
    %v119 = vsub.s32 2, %v118
    %v120 = vrot.slane %v106, %v119
    %v121 = vlaneseq
    %v122 = vshrl.u32 %v121, 7
    %v123 = vsub.s32 3, %v122
    %v124 = vrot.slane %v106, %v123
    %v161 = vunpack.c.l.b16 %v58
    %v162 = vunpack.c.h.b16 %v58
    %v163 = vunpack.c.l.b16 %v59
    %v164 = vunpack.c.h.b16 %v59
    %v165 = vunpack.c.l.b16 %v60
    %v166 = vunpack.c.h.b16 %v60
    %v167 = vunpack.c.l.b16 %v61
    %v168 = vunpack.c.h.b16 %v61
    %v169 = vunpack.c.l.b16 %v62
    %v170 = vunpack.c.h.b16 %v62
    %v171 = vunpack.c.l.b16 %v63
    %v172 = vunpack.c.h.b16 %v63
    %v173 = vunpack.c.l.b16 %v64
    %v174 = vunpack.c.h.b16 %v64
    %v175 = vunpack.c.l.b16 %v65
    %v176 = vunpack.c.h.b16 %v65
    %v177 = vunpack.c.l.b16 %v66
    %v178 = vunpack.c.h.b16 %v66
    %v179 = vunpack.c.l.b16 %v67
    %v180 = vunpack.c.h.b16 %v67
    %v181 = vunpack.c.l.b16 %v68
    %v182 = vunpack.c.h.b16 %v68
    %v183 = vunpack.c.l.b16 %v69
    %v184 = vunpack.c.h.b16 %v69
    %v185 = vunpack.c.l.b16 %v70
    %v186 = vunpack.c.h.b16 %v70
    %v187 = vunpack.c.l.b16 %v71
    %v188 = vunpack.c.h.b16 %v71
    %v189 = vunpack.c.l.b16 %v72
    %v190 = vunpack.c.h.b16 %v72
    %v191 = vunpack.c.l.b16 %v73
    %v192 = vunpack.c.h.b16 %v73
    %v193 = vunpack.c.l.b16 %v74
    %v194 = vunpack.c.h.b16 %v74
    %v195 = vunpack.c.l.b16 %v75
    %v196 = vunpack.c.h.b16 %v75
    %v197 = vunpack.c.l.b16 %v76
    %v198 = vunpack.c.h.b16 %v76
    %v199 = vunpack.c.l.b16 %v77
    %v200 = vunpack.c.h.b16 %v77
    %v201 = vunpack.c.l.b16 %v78
    %v202 = vunpack.c.h.b16 %v78
    %v203 = vunpack.c.l.b16 %v79
    %v204 = vunpack.c.h.b16 %v79
    %v205 = vunpack.c.l.b16 %v80
    %v206 = vunpack.c.h.b16 %v80
    %v207 = vunpack.c.l.b16 %v81
    %v208 = vunpack.c.h.b16 %v81
    %v209 = vunpack.c.l.b16 %v82
    %v210 = vunpack.c.h.b16 %v82
    %v211 = vunpack.c.l.b16 %v83
    %v212 = vunpack.c.h.b16 %v83
    %v213 = vunpack.c.l.b16 %v84
    %v214 = vunpack.c.h.b16 %v84
    %v215 = vunpack.c.l.b16 %v85
    %v216 = vunpack.c.h.b16 %v85
    %v217 = vunpack.c.l.b16 %v86
    %v218 = vunpack.c.h.b16 %v86
    %v219 = vunpack.c.l.b16 %v87
    %v220 = vunpack.c.h.b16 %v87
    %v221 = vunpack.c.l.b16 %v88
    %v222 = vunpack.c.h.b16 %v88
    %v223 = vunpack.c.l.b16 %v89
    %v224 = vunpack.c.h.b16 %v89
    %v225 = vpack.c.b16 %v165, %v161
    %v226 = vpack.c.b16 %v166, %v162
    %v227 = vpack.c.b16 %v167, %v163
    %v228 = vpack.c.b16 %v168, %v164
    %v229 = vpack.c.b16 %v173, %v169
    %v230 = vpack.c.b16 %v174, %v170
    %v231 = vpack.c.b16 %v175, %v171
    %v232 = vpack.c.b16 %v176, %v172
    %v233 = vpack.c.b16 %v181, %v177
    %v234 = vpack.c.b16 %v182, %v178
    %v235 = vpack.c.b16 %v183, %v179
    %v236 = vpack.c.b16 %v184, %v180
    %v237 = vpack.c.b16 %v189, %v185
    %v238 = vpack.c.b16 %v190, %v186
    %v239 = vpack.c.b16 %v191, %v187
    %v240 = vpack.c.b16 %v192, %v188
    %v241 = vpack.c.b16 %v197, %v193
    %v242 = vpack.c.b16 %v198, %v194
    %v243 = vpack.c.b16 %v199, %v195
    %v244 = vpack.c.b16 %v200, %v196
    %v245 = vpack.c.b16 %v205, %v201
    %v246 = vpack.c.b16 %v206, %v202
    %v247 = vpack.c.b16 %v207, %v203
    %v248 = vpack.c.b16 %v208, %v204
    %v249 = vpack.c.b16 %v213, %v209
    %v250 = vpack.c.b16 %v214, %v210
    %v251 = vpack.c.b16 %v215, %v211
    %v252 = vpack.c.b16 %v216, %v212
    %v253 = vpack.c.b16 %v221, %v217
    %v254 = vpack.c.b16 %v222, %v218
    %v255 = vpack.c.b16 %v223, %v219
    %v256 = vpack.c.b16 %v224, %v220
    %289 = vmatprep.subr.bf16.mxu0 %v226
    %290 = vmatpush1.bf16.msra.mxu0 %v225
    %291 = vmatprep.subr.bf16.mxu0 %v230
    %292 = vmatpush1.bf16.msra.mxu0 %v229
    %293 = vmatprep.subr.bf16.mxu0 %v234
    %294 = vmatpush1.bf16.msra.mxu0 %v233
    %295 = vmatprep.subr.bf16.mxu0 %v238
    %296 = vmatpush1.bf16.msra.mxu0 %v237
    %297 = vmatprep.subr.bf16.mxu0 %v242
    %298 = vmatpush1.bf16.msra.mxu0 %v241
    %299 = vmatprep.subr.bf16.mxu0 %v246
    %300 = vmatpush1.bf16.msra.mxu0 %v245
    %301 = vmatprep.subr.bf16.mxu0 %v250
    %302 = vmatpush1.bf16.msra.mxu0 %v249
    %303 = vmatprep.subr.bf16.mxu0 %v254
    %304 = vmatpush1.bf16.msra.mxu0 %v253
    %305 = vmatprep.subr.bf16.mxu0 0
    %306 = vmatpush1.bf16.msra.mxu0 0
    %307 = vmatprep.subr.bf16.mxu0 0
    %308 = vmatpush1.bf16.msra.mxu0 0
    %309 = vmatprep.subr.bf16.mxu0 0
    %310 = vmatpush1.bf16.msra.mxu0 0
    %311 = vmatprep.subr.bf16.mxu0 0
    %312 = vmatpush1.bf16.msra.mxu0 0
    %313 = vmatprep.subr.bf16.mxu0 0
    %314 = vmatpush1.bf16.msra.mxu0 0
    %315 = vmatprep.subr.bf16.mxu0 0
    %316 = vmatpush1.bf16.msra.mxu0 0
    %317 = vmatprep.subr.bf16.mxu0 0
    %318 = vmatpush1.bf16.msra.mxu0 0
    %319 = vmatprep.subr.bf16.mxu0 0
    %320 = vmatpush1.bf16.msra.mxu0 0
    %321 = vmatprep.mubr.bf16.mxu0 0
    %322 = vmatmul.mubr.bf16.gmra.mrb[0].mxu0 %v56
    %v323 = vpop.f32.mrb[0].mxu0
    %v324 = vadd.f32 %v112, %v323
    %v325 = vpop.f32.mrb[0].mxu0
    %v326 = vadd.f32 %v116, %v325
    %v327 = vpop.f32.mrb[0].mxu0
    %v328 = vpop.f32.mrb[0].mxu0
    %329 = vdwg.mxu0
    %330 = vmatprep.subr.bf16.mxu0 %v228
    %331 = vmatpush1.bf16.msra.mxu0 %v227
    %332 = vmatprep.subr.bf16.mxu0 %v232
    %333 = vmatpush1.bf16.msra.mxu0 %v231
    %334 = vmatprep.subr.bf16.mxu0 %v236
    %335 = vmatpush1.bf16.msra.mxu0 %v235
    %336 = vmatprep.subr.bf16.mxu0 %v240
    %337 = vmatpush1.bf16.msra.mxu0 %v239
    %338 = vmatprep.subr.bf16.mxu0 %v244
    %339 = vmatpush1.bf16.msra.mxu0 %v243
    %340 = vmatprep.subr.bf16.mxu0 %v248
    %341 = vmatpush1.bf16.msra.mxu0 %v247
    %342 = vmatprep.subr.bf16.mxu0 %v252
    %343 = vmatpush1.bf16.msra.mxu0 %v251
    %344 = vmatprep.subr.bf16.mxu0 %v256
    %345 = vmatpush1.bf16.msra.mxu0 %v255
    %346 = vmatprep.subr.bf16.mxu0 0
    %347 = vmatpush1.bf16.msra.mxu0 0
    %348 = vmatprep.subr.bf16.mxu0 0
    %349 = vmatpush1.bf16.msra.mxu0 0
    %350 = vmatprep.subr.bf16.mxu0 0
    %351 = vmatpush1.bf16.msra.mxu0 0
    %352 = vmatprep.subr.bf16.mxu0 0
    %353 = vmatpush1.bf16.msra.mxu0 0
    %354 = vmatprep.subr.bf16.mxu0 0
    %355 = vmatpush1.bf16.msra.mxu0 0
    %356 = vmatprep.subr.bf16.mxu0 0
    %357 = vmatpush1.bf16.msra.mxu0 0
    %358 = vmatprep.subr.bf16.mxu0 0
    %359 = vmatpush1.bf16.msra.mxu0 0
    %360 = vmatprep.subr.bf16.mxu0 0
    %361 = vmatpush1.bf16.msra.mxu0 0
    %362 = vmatprep.mubr.bf16.mxu0 0
    %363 = vmatmul.mubr.bf16.gmra.mrb[0].mxu0 %v56
    %v364 = vpop.f32.mrb[0].mxu0
    %v365 = vadd.f32 %v120, %v364
    %v366 = vpop.f32.mrb[0].mxu0
    %v367 = vadd.f32 %v124, %v366
    %v368 = vpop.f32.mrb[0].mxu0
    %v369 = vpop.f32.mrb[0].mxu0
    %370 = vdwg.mxu0
    %v371 = vmul.f32 %v324, 0.5
    %v372 = vtanh.pop %v371
    %v373 = vadd.f32 %v372, 1.0
    %v374 = vmul.f32 %v373, 0.5
    %v375 = vmul.f32 %v326, 0.5
    %v376 = vtanh.pop %v375
    %v377 = vadd.f32 %v376, 1.0
    %v378 = vmul.f32 %v377, 0.5
    %v379 = vtanh.pop %v365
    %v380 = vmul.f32 %v367, 0.5
    %v381 = vtanh.pop %v380
    %v382 = vadd.f32 %v381, 1.0
    %v383 = vmul.f32 %v382, 0.5
    %v384 = vmul.f32 %v378, %v57
    %v385 = vmul.f32 %v374, %v379
    %v386 = vadd.f32 %v384, %v385
    %v387 = vtanh.pop %v386
    %v388 = vmul.f32 %v383, %v387
    %v389 = vpack.c.bf16 %v388, %v388
    %v391 = vlaneseq
    %v392 = vshrl.u32 %v391, 7
    %v393 = vsub.s32 0, %v392
    %v394 = vrot.slane %v107, %v393
    %v412 = vunpack.c.l.b16 %v90
    %v413 = vunpack.c.l.b16 %v91
    %v414 = vunpack.c.l.b16 %v92
    %v415 = vunpack.c.l.b16 %v93
    %v416 = vunpack.c.l.b16 %v94
    %v417 = vunpack.c.l.b16 %v95
    %v418 = vunpack.c.l.b16 %v96
    %v419 = vunpack.c.l.b16 %v97
    %v420 = vunpack.c.l.b16 %v98
    %v421 = vunpack.c.l.b16 %v99
    %v422 = vunpack.c.l.b16 %v100
    %v423 = vunpack.c.l.b16 %v101
    %v424 = vunpack.c.l.b16 %v102
    %v425 = vunpack.c.l.b16 %v103
    %v426 = vunpack.c.l.b16 %v104
    %v427 = vunpack.c.l.b16 %v105
    %v428 = vpack.c.b16 %v413, %v412
    %v429 = vpack.c.b16 %v415, %v414
    %v430 = vpack.c.b16 %v417, %v416
    %v431 = vpack.c.b16 %v419, %v418
    %v432 = vpack.c.b16 %v421, %v420
    %v433 = vpack.c.b16 %v423, %v422
    %v434 = vpack.c.b16 %v425, %v424
    %v435 = vpack.c.b16 %v427, %v426
    %444 = vmatprep.subr.bf16.mxu0 0
    %445 = vmatpush1.bf16.msra.mxu0 %v428
    %446 = vmatprep.subr.bf16.mxu0 0
    %447 = vmatpush1.bf16.msra.mxu0 %v429
    %448 = vmatprep.subr.bf16.mxu0 0
    %449 = vmatpush1.bf16.msra.mxu0 %v430
    %450 = vmatprep.subr.bf16.mxu0 0
    %451 = vmatpush1.bf16.msra.mxu0 %v431
    %452 = vmatprep.subr.bf16.mxu0 0
    %453 = vmatpush1.bf16.msra.mxu0 %v432
    %454 = vmatprep.subr.bf16.mxu0 0
    %455 = vmatpush1.bf16.msra.mxu0 %v433
    %456 = vmatprep.subr.bf16.mxu0 0
    %457 = vmatpush1.bf16.msra.mxu0 %v434
    %458 = vmatprep.subr.bf16.mxu0 0
    %459 = vmatpush1.bf16.msra.mxu0 %v435
    %460 = vmatprep.subr.bf16.mxu0 0
    %461 = vmatpush1.bf16.msra.mxu0 0
    %462 = vmatprep.subr.bf16.mxu0 0
    %463 = vmatpush1.bf16.msra.mxu0 0
    %464 = vmatprep.subr.bf16.mxu0 0
    %465 = vmatpush1.bf16.msra.mxu0 0
    %466 = vmatprep.subr.bf16.mxu0 0
    %467 = vmatpush1.bf16.msra.mxu0 0
    %468 = vmatprep.subr.bf16.mxu0 0
    %469 = vmatpush1.bf16.msra.mxu0 0
    %470 = vmatprep.subr.bf16.mxu0 0
    %471 = vmatpush1.bf16.msra.mxu0 0
    %472 = vmatprep.subr.bf16.mxu0 0
    %473 = vmatpush1.bf16.msra.mxu0 0
    %474 = vmatprep.subr.bf16.mxu0 0
    %475 = vmatpush1.bf16.msra.mxu0 0
    %476 = vmatprep.mubr.bf16.mxu0 0
    %477 = vmatmul.mubr.bf16.gmra.mrb[0].mxu0 %v389
    %v478 = vpop.f32.mrb[0].mxu0
    %v479 = vadd.f32 %v394, %v478
    %v480 = vpop.f32.mrb[0].mxu0
    %v481 = vpop.f32.mrb[0].mxu0
    %v482 = vpop.f32.mrb[0].mxu0
    %483 = vdwg.mxu0
    %484 = vst [vmem:[#allocation8] sm:$0xff] %v479
    // Predicated region
    $region30: #{tpu_custom_call.1} parent=1 // pred_check
      _
    $region31: #{tpu_custom_call.1} parent=1 // pred_check_branch
      %486 = sbr.rel (0) target = $region33
    $region32: #{tpu_custom_call.1} parent=1 // pred_region
      %s488 = ssub.s32 128, 128
      %489 = vsyncadd [#allocation4], %s488
      %s491 = sshll.u32 [#allocation8], 4
      %s492 = int_to_ptr.vmem [resolvable:$true] %s491
      %494 = dma.vmem_to_hbm [thread:$0]  %s492, 128, %s4, [#allocation4]
    $region33: #{tpu_custom_call.1} parent=1 // pred_fallthru
      _
    // Predicated region
    $region34: #{tpu_custom_call.1} parent=1 // pred_check
      _
    $region35: #{tpu_custom_call.1} parent=1 // pred_check_branch
      %496 = sbr.rel (0) target = $region37
    $region36: #{tpu_custom_call.1} parent=1 // pred_region
      %497 = dma.done [#allocation4], 128
    $region37: #{tpu_custom_call.1} parent=1 // pred_fallthru
      _
    %498 = vsyncpa [#allocation3], 1
    %499 = vsyncpa [#allocation6], 1
    %500 = vsyncpa [#allocation4], 1

</llo_original>
